<compile_context>
chip_gen: v6e
topology: v6e:2x2x1
jax: 0.10.0
libtpu: 0.0.40
codegen_flags: <defaults>
</compile_context>

<pallas_src>
import functools

import jax
import jax.numpy as jnp
from jax.experimental import pallas as pl
from jax.experimental.pallas import tpu as pltpu


def decoder_kernel(y_ref, w_ref, b_ref, t_ref, o_ref):
    # y_ref: (tb, C) bf16   w_ref: (C, D) bf16   b_ref: (1, D) f32
    # t_ref: (D, D) f32     o_ref: (tb, D) f32
    logits = jnp.dot(y_ref[...], w_ref[...], preferred_element_type=jnp.float32)
    logits = logits + b_ref[...]                       # broadcast (1, D) over rows

    # Row-max subtraction: exp(-m) scales numerator and denominator identically
    # (m is a per-row scalar), so the result is unchanged but overflow-safe.
    m = jnp.max(logits, axis=1, keepdims=True)
    e = jnp.exp(logits - m)                            # (tb, D) f32

    denom = jnp.dot(e, t_ref[...], preferred_element_type=jnp.float32)
    o_ref[...] = (e * pl.reciprocal(denom, approx=True)).astype(o_ref.dtype)


def decoder_forward(y, weights, biases, template, *, block_b=256):
    """y: [B, C] f32, weights: [C, D] f32, biases: [D] f32, template: [D, D] f32
    -> [B, D] f32 (matches Decoder.forward)."""
    B, C = y.shape
    C2, D = weights.shape
    assert C == C2
    assert biases.shape == (D,)
    assert template.shape == (D, D)

    # --- tile-size budgeting (double-buffered tiles + resident W/b/T) -------
    def vmem_bytes(tb):
        return (2 * tb * C * 2          # y tile, bf16, 2 buffers
                + 2 * tb * D * 4        # out tile, f32, 2 buffers
                + 2 * (C * D * 2 + D * 4 + D * D * 4))  # resident W/b/T
    VMEM_BUDGET = 24 * 1024 * 1024      # headroom vs. v7x's 32 MiB scoped VMEM

    tb = min(block_b, B)
    while tb > 8 and vmem_bytes(tb) > VMEM_BUDGET:
        tb = max(8, tb // 2)
    if tb < B:
        tb = max(8, (tb // 8) * 8)      # keep sublane (8) alignment when tiling

    # Pad batch to a multiple of the tile (padded rows sliced off afterwards).
    num_tiles = pl.cdiv(B, tb)
    Bp = num_tiles * tb
    if Bp != B:
        y = jnp.pad(y, ((0, Bp - B), (0, 0)))

    # bf16 at the boundary: halves HBM bytes for y/W, feeds the MXU's native
    # bf16 path on v6e/v7x; accumulation stays f32 inside the kernel.
    y_bf16 = y.astype(jnp.bfloat16)
    w_bf16 = weights.astype(jnp.bfloat16)
    b2d = biases.reshape(1, D).astype(jnp.float32)
    t_f32 = template.astype(jnp.float32)

    cost = pl.CostEstimate(
        flops=2 * Bp * C * D + 2 * Bp * D * D,
        transcendentals=2 * Bp * D,                     # exp + reciprocal
        bytes_accessed=Bp * C * 2 + C * D * 2 + D * 4 + D * D * 4 + Bp * D * 4,
    )

    out = pl.pallas_call(
        decoder_kernel,
        out_shape=jax.ShapeDtypeStruct((Bp, D), jnp.float32),
        grid=(num_tiles,),
        in_specs=[
            pl.BlockSpec((tb, C), lambda i: (i, 0)),    # y: tiled over batch
            pl.BlockSpec((C, D), lambda i: (0, 0)),     # W: resident
            pl.BlockSpec((1, D), lambda i: (0, 0)),     # b: resident
            pl.BlockSpec((D, D), lambda i: (0, 0)),     # template: resident
        ],
        out_specs=pl.BlockSpec((tb, D), lambda i: (i, 0)),
        compiler_params=pltpu.CompilerParams(
            dimension_semantics=("parallel",),          # v7x: shard over 2 TCs
        ),
        cost_estimate=cost,
    )(y_bf16, w_bf16, b2d, t_f32)

    return out[:B] if Bp != B else out


def init_params(key, category_size, input_size):
    # nn.init.trunc_normal_(weights, mean=0.0, std=0.01): truncated at +/-2 std
    wkey, _ = jax.random.split(key)
    weights = 0.01 * jax.random.truncated_normal(
        wkey, -2.0, 2.0, (category_size, input_size), dtype=jnp.float32
    )
    biases = jnp.zeros((input_size,), dtype=jnp.float32)
    return weights, biases


if __name__ == "__main__":
    key = jax.random.PRNGKey(0)
    ky, kp = jax.random.split(key)

    batch = 64
    category_size = 32
    num_sources, classes_per_source = 8, 16
    input_size = num_sources * classes_per_source      # 128 -> lane-dense output

    y = jax.random.normal(ky, (batch, category_size), dtype=jnp.float32)
    weights, biases = init_params(kp, category_size, input_size)

    # source-wise template: block of ones per source (per-source softmax denom)
    template = jnp.kron(
        jnp.eye(num_sources, dtype=jnp.float32),
        jnp.ones((classes_per_source, classes_per_source), dtype=jnp.float32),
    )

    out = decoder_forward(y, weights, biases, template, block_b=16)
    out = jax.block_until_ready(out)

    # pure-JAX f32 reference of Decoder.forward
    logits = y @ weights + biases
    e = jnp.exp(logits)
    ref = e / (e @ template)

    assert out.shape == (batch, input_size)
    # bf16 matmul inputs + approx reciprocal -> looser tolerance than pure f32
    assert jnp.allclose(out, ref, atol=2e-2, rtol=2e-2)
    # each source group is a softmax -> sums to 1
    group_sums = out.reshape(batch, num_sources, classes_per_source).sum(-1)
    assert jnp.allclose(group_sums, 1.0, atol=1e-2)

    print("KERNEL_OK")
</pallas_src>

<mosaic_0001>
module attributes {stable_mosaic.version = 11 : i64} {
  func.func @decoder_kernel(%arg0: i32, %arg1: memref<16x32xbf16, #tpu.memory_space<vmem>>, %arg2: memref<32x128xbf16, #tpu.memory_space<vmem>>, %arg3: memref<1x128xf32, #tpu.memory_space<vmem>>, %arg4: memref<128x128xf32, #tpu.memory_space<vmem>>, %arg5: memref<16x128xf32, #tpu.memory_space<vmem>>) attributes {dimension_semantics = [#tpu.dimension_semantics<parallel>], iteration_bounds = array<i64: 4>, scalar_prefetch = 0 : i64, scratch_operands = 0 : i64, tpu.core_type = #tpu.core_type<tc>, window_params = [{transform_indices = @transform_0, window_bounds = array<i64: 16, 32>}, {pipeline_mode = #tpu.pipeline_mode<synchronous>, transform_indices = @transform_1, window_bounds = array<i64: 32, 128>}, {pipeline_mode = #tpu.pipeline_mode<synchronous>, transform_indices = @transform_2, window_bounds = array<i64: 1, 128>}, {pipeline_mode = #tpu.pipeline_mode<synchronous>, transform_indices = @transform_3, window_bounds = array<i64: 128, 128>}, {transform_indices = @transform_4, window_bounds = array<i64: 16, 128>}]} {
    %c0 = arith.constant 0 : index
    %c0_0 = arith.constant 0 : index
    %0 = vector.load %arg1[%c0, %c0_0] : memref<16x32xbf16, #tpu.memory_space<vmem>>, vector<16x32xbf16>
    %c0_1 = arith.constant 0 : index
    %c0_2 = arith.constant 0 : index
    %1 = vector.load %arg2[%c0_1, %c0_2] : memref<32x128xbf16, #tpu.memory_space<vmem>>, vector<32x128xbf16>
    %cst = arith.constant dense<0.000000e+00> : vector<16x128xf32>
    %2 = tpu.matmul %0, %1, %cst {dimension_numbers = #tpu.dot_dimension_numbers<[1], [0], [0], [1], [0, 0, 1, 1], [], []>} : vector<16x32xbf16>, vector<32x128xbf16>, vector<16x128xf32> -> vector<16x128xf32>
    %c0_3 = arith.constant 0 : index
    %c0_4 = arith.constant 0 : index
    %3 = vector.load %arg3[%c0_3, %c0_4] : memref<1x128xf32, #tpu.memory_space<vmem>>, vector<1x128xf32>
    %4 = vector.broadcast %3 : vector<1x128xf32> to vector<16x128xf32>
    %5 = arith.addf %2, %4 : vector<16x128xf32>
    %cst_5 = arith.constant dense<0xFF800000> : vector<16xf32>
    %6 = vector.multi_reduction <maximumf>, %5, %cst_5 [1] : vector<16x128xf32> to vector<16xf32>
    %7 = vector.shape_cast %6 : vector<16xf32> to vector<16x1xf32>
    %8 = vector.broadcast %7 : vector<16x1xf32> to vector<16x128xf32>
    %9 = arith.subf %5, %8 : vector<16x128xf32>
    %10 = math.exp %9 : vector<16x128xf32>
    %c0_6 = arith.constant 0 : index
    %c0_7 = arith.constant 0 : index
    %11 = vector.load %arg4[%c0_6, %c0_7] : memref<128x128xf32, #tpu.memory_space<vmem>>, vector<128x128xf32>
    %cst_8 = arith.constant dense<0.000000e+00> : vector<16x128xf32>
    %12 = tpu.matmul %10, %11, %cst_8 {dimension_numbers = #tpu.dot_dimension_numbers<[1], [0], [0], [1], [0, 0, 1, 1], [], []>} : vector<16x128xf32>, vector<128x128xf32>, vector<16x128xf32> -> vector<16x128xf32>
    %13 = tpu.reciprocal %12 {approx = true} : vector<16x128xf32> -> vector<16x128xf32>
    %14 = arith.mulf %10, %13 : vector<16x128xf32>
    %c0_9 = arith.constant 0 : index
    %c0_10 = arith.constant 0 : index
    %15 = vector.load %arg5[%c0_9, %c0_10] : memref<16x128xf32, #tpu.memory_space<vmem>>, vector<16x128xf32>
    tpu.vector_store %arg5[%c0_9, %c0_10], %14 {strides = array<i32>} : memref<16x128xf32, #tpu.memory_space<vmem>>, vector<16x128xf32>,
    return
  }
  func.func @transform_0(%arg0: i32) -> (i32, i32) {
    %c0_i32 = arith.constant 0 : i32
    %c0_i32_0 = arith.constant 0 : i32
    return %arg0, %c0_i32 : i32, i32
  }
  func.func @transform_1(%arg0: i32) -> (i32, i32) {
    %c0_i32 = arith.constant 0 : i32
    %c0_i32_0 = arith.constant 0 : i32
    %c0_i32_1 = arith.constant 0 : i32
    return %c0_i32, %c0_i32_0 : i32, i32
  }
  func.func @transform_2(%arg0: i32) -> (i32, i32) {
    %c0_i32 = arith.constant 0 : i32
    %c0_i32_0 = arith.constant 0 : i32
    %c0_i32_1 = arith.constant 0 : i32
    return %c0_i32, %c0_i32_0 : i32, i32
  }
  func.func @transform_3(%arg0: i32) -> (i32, i32) {
    %c0_i32 = arith.constant 0 : i32
    %c0_i32_0 = arith.constant 0 : i32
    %c0_i32_1 = arith.constant 0 : i32
    return %c0_i32, %c0_i32_0 : i32, i32
  }
  func.func @transform_4(%arg0: i32) -> (i32, i32) {
    %c0_i32 = arith.constant 0 : i32
    %c0_i32_0 = arith.constant 0 : i32
    return %arg0, %c0_i32 : i32, i32
  }
}

</mosaic_0001>

<llo_original>
// kernel: tpu_custom_call.1
$region0: #{tpu_custom_call.1}
  #allocation0 [shape = 'u32[]', space=smem, size = 0x4, offset = 0x4, fixed_abs, tag = 'smem constant byte address 0x4 - core index']
  #allocation1 [shape = 'u32[144,128]{1,0:T(1,128)}', space=vmem, size = 0x12000, scoped, tag = 'internal scratch']
  %s0 = inlined_call_operand.vmem [shape: bf16[64,32], index: 0, kind: input, shape index: {}]
  %s1 = inlined_call_operand.vmem [shape: bf16[32,128], index: 1, kind: input, shape index: {}]
  %s2 = inlined_call_operand.vmem [shape: f32[1,128], index: 2, kind: input, shape index: {}]
  %s3 = inlined_call_operand.hbm [shape: f32[128,128], index: 3, kind: input, shape index: {}]
  %s4 = inlined_call_operand.hbm [shape: f32[64,128], index: 4, kind: output, shape index: {}]
  %s5 = sld [smem:[#allocation0]]
  $region53: #{tpu_custom_call.1} parent=0
    _
  %s7 = ssub.s32 1, %s5
  %s8 = scalar_select 0, %s7, %s5
  $region1: #{tpu_custom_call.1} parent=0
    #allocation2 [shape = 'u8[65536]{0}', space=vmem, size = 0x10000, scoped, tag = 'input window, operand 3, single buffered']
    #allocation3 [shape = 's32[2]{0}', space=sflag, size = 0x8, scoped, tag = 'scoped memory for tpu_custom_call.1']
    #allocation4 [shape = 's32[2]{0}', space=sflag, size = 0x8, scoped, tag = 'scoped memory for tpu_custom_call.1']
    #allocation5 [shape = 'u8[16384]{0}', space=vmem, size = 0x4000, scoped, tag = 'output window, operand 0']
    %9 = vsyncpa [#allocation3], 0
    %10 = vsyncpa [#allocation4], 0
    %s11 = scalar_lea.sflag [#allocation4], 1
    %12 = vsyncpa %s11, 0
    loop: start=0, step=1, limit=6
    $region2: #{tpu_custom_call.1} parent=1 // loop_pre_header
      _
    $region3: #{tpu_custom_call.1} parent=1 // loop_header
      %s14 = sphi 0, %s18
      %p15 = scmp.ge.s32.totalorder %s14, 6
      %s24 = sphi 0, %s26
      %s27 = sphi 0, %s24
      %s28 = sphi 0, %s27
      %s44 = sphi 0, %s28
      %s48 = sphi 0, %s48
      %s50 = sphi 0, %s48
      %s51 = sphi 0, %s50
      %s65 = sphi 0, %s51
      %s69 = sphi 0, %s69
      %s71 = sphi 0, %s69
      %s72 = sphi 0, %s71
      %s86 = sphi 0, %s72
      %s90 = sphi 0, %s90
      %s92 = sphi 0, %s90
      %s93 = sphi 0, %s92
      %s107 = sphi 0, %s93
      %s113 = sphi 0, %s115
      %s116 = sphi 0, %s113
      %s117 = sphi 0, %s116
      %s133 = sphi 0, %s117
    $region4: #{tpu_custom_call.1} parent=1 // loop_header_branch
      %17 = sbr.rel (%p15) target = $region8
    $region5: #{tpu_custom_call.1} parent=1 // loop_body
      %s19 = ssub.s32 %s14, 1
      %s20 = ssub.s32 %s14, 2
      %s21 = sadd.s32 %s14, 1
      %s22 = ssub.s32 %s14, %s21
      %p23 = scmp.eq.s32.totalorder %s22, 0
      %s25 = sadd.s32 %s24, 1
      %s26 = scalar_select %p23, %s24, %s25
      %p29 = pneg %p23
      %p30 = scmp.eq.s32.totalorder %s14, 3
      %p31 = por %p29, %p30
      %p32 = scmp.ne.s32.totalorder %s24, %s27
      %p33 = scmp.eq.s32.totalorder %s14, 0
      %p34 = por %p32, %p33
      %p35 = scmp.ne.s32.totalorder %s24, %s27
      %p36 = scmp.eq.s32.totalorder %s19, 3
      %p37 = por %p35, %p36
      %p38 = scmp.ne.s32.totalorder %s27, %s28
      %p39 = scmp.eq.s32.totalorder %s19, 0
      %p40 = por %p38, %p39
      %p41 = scmp.ne.s32.totalorder %s27, %s28
      %p42 = scmp.eq.s32.totalorder %s20, 3
      %p43 = por %p41, %p42
      %p45 = scmp.ne.s32.totalorder %s28, %s44
      %p46 = scmp.eq.s32.totalorder %s20, 0
      %p47 = por %p45, %p46
      %s49 = sadd.s32 %s48, 1
      %p52 = scmp.eq.s32.totalorder %s14, 3
      %p53 = scmp.ne.s32.totalorder %s48, %s50
      %p54 = scmp.eq.s32.totalorder %s14, 0
      %p55 = por %p53, %p54
      %p56 = scmp.ne.s32.totalorder %s48, %s50
      %p57 = scmp.eq.s32.totalorder %s19, 3
      %p58 = por %p56, %p57
      %p59 = scmp.ne.s32.totalorder %s50, %s51
      %p60 = scmp.eq.s32.totalorder %s19, 0
      %p61 = por %p59, %p60
      %p62 = scmp.ne.s32.totalorder %s50, %s51
      %p63 = scmp.eq.s32.totalorder %s20, 3
      %p64 = por %p62, %p63
      %p66 = scmp.ne.s32.totalorder %s51, %s65
      %p67 = scmp.eq.s32.totalorder %s20, 0
      %p68 = por %p66, %p67
      %s70 = sadd.s32 %s69, 1
      %p73 = scmp.eq.s32.totalorder %s14, 3
      %p74 = scmp.ne.s32.totalorder %s69, %s71
      %p75 = scmp.eq.s32.totalorder %s14, 0
      %p76 = por %p74, %p75
      %p77 = scmp.ne.s32.totalorder %s69, %s71
      %p78 = scmp.eq.s32.totalorder %s19, 3
      %p79 = por %p77, %p78
      %p80 = scmp.ne.s32.totalorder %s71, %s72
      %p81 = scmp.eq.s32.totalorder %s19, 0
      %p82 = por %p80, %p81
      %p83 = scmp.ne.s32.totalorder %s71, %s72
      %p84 = scmp.eq.s32.totalorder %s20, 3
      %p85 = por %p83, %p84
      %p87 = scmp.ne.s32.totalorder %s72, %s86
      %p88 = scmp.eq.s32.totalorder %s20, 0
      %p89 = por %p87, %p88
      %s91 = sadd.s32 %s90, 1
      %p94 = scmp.eq.s32.totalorder %s14, 3
      %p95 = scmp.ne.s32.totalorder %s90, %s92
      %p96 = scmp.eq.s32.totalorder %s14, 0
      %p97 = por %p95, %p96
      %p98 = scmp.ne.s32.totalorder %s90, %s92
      %p99 = scmp.eq.s32.totalorder %s19, 3
      %p100 = por %p98, %p99
      %p101 = scmp.ne.s32.totalorder %s92, %s93
      %p102 = scmp.eq.s32.totalorder %s19, 0
      %p103 = por %p101, %p102
      %p104 = scmp.ne.s32.totalorder %s92, %s93
      %p105 = scmp.eq.s32.totalorder %s20, 3
      %p106 = por %p104, %p105
      %p108 = scmp.ne.s32.totalorder %s93, %s107
      %p109 = scmp.eq.s32.totalorder %s20, 0
      %p110 = por %p108, %p109
      %s111 = ssub.s32 %s14, %s21
      %p112 = scmp.eq.s32.totalorder %s111, 0
      %s114 = sadd.s32 %s113, 1
      %s115 = scalar_select %p112, %s113, %s114
      %p118 = pneg %p112
      %p119 = scmp.eq.s32.totalorder %s14, 3
      %p120 = por %p118, %p119
      %p121 = scmp.ne.s32.totalorder %s113, %s116
      %p122 = scmp.eq.s32.totalorder %s14, 0
      %p123 = por %p121, %p122
      %p124 = scmp.ne.s32.totalorder %s113, %s116
      %p125 = scmp.eq.s32.totalorder %s19, 3
      %p126 = por %p124, %p125
      %p127 = scmp.ne.s32.totalorder %s116, %s117
      %p128 = scmp.eq.s32.totalorder %s19, 0
      %p129 = por %p127, %p128
      %p130 = scmp.ne.s32.totalorder %s116, %s117
      %p131 = scmp.eq.s32.totalorder %s20, 3
      %p132 = por %p130, %p131
      %p134 = scmp.ne.s32.totalorder %s117, %s133
      %p135 = scmp.eq.s32.totalorder %s20, 0
      %p136 = por %p134, %p135
      %p137 = scmp.le.s32.totalorder 1, %s14
      %p138 = scmp.lt.s32.totalorder %s14, 5
      %p139 = pnand %p137, %p138
      %p140 = pneg %p139
      // Predicated region
      $region9: #{tpu_custom_call.1} parent=5 // pred_check
        _
      $region10: #{tpu_custom_call.1} parent=5 // pred_check_branch
        %142 = sbr.rel (%p139) target = $region12
      $region11: #{tpu_custom_call.1} parent=5 // pred_region
        %s143 = ssub.s32 %s14, 1
        // Predicated region
        $region13: #{tpu_custom_call.1} parent=11 // pred_check
          %p144 = pneg %p61
        $region14: #{tpu_custom_call.1} parent=11 // pred_check_branch
          %146 = sbr.rel (%p144) target = $region16
        $region15: #{tpu_custom_call.1} parent=11 // pred_region
          _
        $region16: #{tpu_custom_call.1} parent=11 // pred_fallthru
          _
        // Predicated region
        $region17: #{tpu_custom_call.1} parent=11 // pred_check
          %p147 = pneg %p82
        $region18: #{tpu_custom_call.1} parent=11 // pred_check_branch
          %149 = sbr.rel (%p147) target = $region20
        $region19: #{tpu_custom_call.1} parent=11 // pred_region
          _
        $region20: #{tpu_custom_call.1} parent=11 // pred_fallthru
          _
        // Predicated region
        $region21: #{tpu_custom_call.1} parent=11 // pred_check
          %p150 = pneg %p103
        $region22: #{tpu_custom_call.1} parent=11 // pred_check_branch
          %152 = sbr.rel (%p150) target = $region24
        $region23: #{tpu_custom_call.1} parent=11 // pred_region
          %s154 = ssub.s32 2048, 2048
          %155 = vsyncadd [#allocation3], %s154
          %s156 = sshll.u32 [#allocation2], 4
          %s157 = int_to_ptr.vmem [resolvable:$true] %s156
          %162 = dma.hbm_to_vmem [thread:$0]  %s3, 2048, %s157, [#allocation3], 128, 128, 8
        $region24: #{tpu_custom_call.1} parent=11 // pred_fallthru
          _
      $region12: #{tpu_custom_call.1} parent=5 // pred_fallthru
        _
      %p163 = scmp.lt.s32.totalorder %s14, 4
      // Predicated region
      $region25: #{tpu_custom_call.1} parent=5 // pred_check
        %p164 = pneg %p163
      $region26: #{tpu_custom_call.1} parent=5 // pred_check_branch
        %166 = sbr.rel (%p164) target = $region28
      $region27: #{tpu_custom_call.1} parent=5 // pred_region
        // Predicated region
        $region29: #{tpu_custom_call.1} parent=27 // pred_check
          %p167 = pneg %p34
        $region30: #{tpu_custom_call.1} parent=27 // pred_check_branch
          %169 = sbr.rel (%p167) target = $region32
        $region31: #{tpu_custom_call.1} parent=27 // pred_region
          %s170 = smul.u32 2, %s14
          %p171 = scmp.lt.s32.totalorder %s170, 7
          %s172 = scalar_select %p171, %s170, 7
          %s173 = smul.addr %s172, 4
          %s174 = scalar_lea.vmem %s0, %s173
          %s175 = smul.u32 2, %s14
        $region32: #{tpu_custom_call.1} parent=27 // pred_fallthru
          _
      $region28: #{tpu_custom_call.1} parent=5 // pred_fallthru
        _
      %p176 = scmp.le.s32.totalorder 1, %s14
      %p177 = scmp.lt.s32.totalorder %s14, 5
      %p178 = pnand %p176, %p177
      %p179 = pneg %p178
      // Predicated region
      $region33: #{tpu_custom_call.1} parent=5 // pred_check
        _
      $region34: #{tpu_custom_call.1} parent=5 // pred_check_branch
        %181 = sbr.rel (%p178) target = $region36
      $region35: #{tpu_custom_call.1} parent=5 // pred_region
        %s182 = ssub.s32 %s14, 1
        // Predicated region
        $region37: #{tpu_custom_call.1} parent=35 // pred_check
          %p183 = pneg %p103
        $region38: #{tpu_custom_call.1} parent=35 // pred_check_branch
          %185 = sbr.rel (%p183) target = $region40
        $region39: #{tpu_custom_call.1} parent=35 // pred_region
          %186 = dma.done [#allocation3], 2048
        $region40: #{tpu_custom_call.1} parent=35 // pred_fallthru
          _
        %s187 = smul.u32 2, %s19
        %p188 = scmp.lt.s32.totalorder %s187, 7
        %s189 = scalar_select %p188, %s187, 7
        %s190 = smul.addr %s189, 4
        %s191 = scalar_lea.vmem %s0, %s190
        %p192 = pneg %p40
        %p193 = pneg %p37
        %p194 = pneg %p61
        %p195 = pneg %p58
        %p196 = pneg %p82
        %p197 = pneg %p79
        %p198 = pneg %p103
        %p199 = pneg %p100
        %p200 = pneg %p129
        %p201 = pneg %p126
        %s202 = sand.u32 %s116, 1
        %s203 = scalar_lea.sflag [#allocation4], %s202
        %s204 = sand.u32 %s116, 1
        %s205 = smul.addr %s204, 16
        %s206 = scalar_lea.vmem [#allocation5], %s205
        %s207 = smul.u32 2, %s19
        %p208 = scmp.lt.s32.totalorder %s207, 7
        %s209 = scalar_select %p208, %s207, 7
        %s210 = smul.addr %s209, 4
        %s211 = scalar_lea.vmem %s0, %s210
        %s212 = smul.u32 2, %s19
        %s213 = smul.u32 2, %s19
        %v215 = vld [vmem:[%s211] sm:$0xf]
        %v216 = vld [vmem:[%s211 + $0x4] sm:$0xf]
        %v217 = vld [vmem:[%s1] sm:$0xf]
        %v218 = vld [vmem:[%s1 + $0x4] sm:$0xf]
        %v219 = vld [vmem:[%s1 + $0x8] sm:$0xf]
        %v220 = vld [vmem:[%s1 + $0xc] sm:$0xf]
        %v221 = vld [vmem:[%s2] sm:$0x1]
        %v223 = vlaneseq
        %v224 = vshrl.u32 %v223, 7
        %v225 = vsub.s32 0, %v224
        %v226 = vrot.slane %v221, %v225
        %v230 = vunpack.c.l.b16 %v215
        %v231 = vunpack.c.l.b16 %v216
        %v232 = vpack.c.b16 %v231, %v230
        %v237 = vunpack.c.l.b16 %v217
        %v238 = vunpack.c.l.b16 %v218
        %v239 = vunpack.c.l.b16 %v219
        %v240 = vunpack.c.l.b16 %v220
        %v241 = vpack.c.b16 %v238, %v237
        %v242 = vpack.c.b16 %v240, %v239
        %vm245 = vcmask 261120
        %v247 = vsel %vm245, %v232, 0
        %249 = vmatprep.subr.bf16.mxu0 0
        %250 = vmatpush1.bf16.msra.mxu0 0
        %251 = vmatprep.subr.bf16.mxu0 0
        %252 = vmatpush1.bf16.msra.mxu0 0
        %253 = vmatprep.subr.bf16.mxu0 0
        %254 = vmatpush1.bf16.msra.mxu0 0
        %255 = vmatprep.subr.bf16.mxu0 0
        %256 = vmatpush1.bf16.msra.mxu0 0
        %257 = vmatprep.subr.bf16.mxu0 0
        %258 = vmatpush1.bf16.msra.mxu0 0
        %259 = vmatprep.subr.bf16.mxu0 0
        %260 = vmatpush1.bf16.msra.mxu0 0
        %261 = vmatprep.subr.bf16.mxu0 0
        %262 = vmatpush1.bf16.msra.mxu0 %v242
        %263 = vmatprep.subr.bf16.mxu0 0
        %264 = vmatpush1.bf16.msra.mxu0 %v241
        %265 = vmatprep.subr.bf16.mxu0 0
        %266 = vmatpush2.bf16.msra.mxu0 0
        %267 = vmatprep.subr.bf16.mxu0 0
        %268 = vmatpush2.bf16.msra.mxu0 0
        %269 = vmatprep.subr.bf16.mxu0 0
        %270 = vmatpush2.bf16.msra.mxu0 0
        %271 = vmatprep.subr.bf16.mxu0 0
        %272 = vmatpush2.bf16.msra.mxu0 0
        %273 = vmatprep.subr.bf16.mxu0 0
        %274 = vmatpush2.bf16.msra.mxu0 0
        %275 = vmatprep.subr.bf16.mxu0 0
        %276 = vmatpush2.bf16.msra.mxu0 0
        %277 = vmatprep.subr.bf16.mxu0 0
        %278 = vmatpush2.bf16.msra.mxu0 0
        %279 = vmatprep.subr.bf16.mxu0 0
        %280 = vmatpush2.bf16.msra.mxu0 0
        %281 = vmatprep.mubr.bf16.mxu0 0
        %282 = vmatmul.mubr.bf16.gmra.mxu0 %v247
        %v283 = vpop.f32.mrf.mxu0
        %v284 = vadd.f32 %v226, %v283
        %v285 = vpop.f32.mrf.mxu0
        %v286 = vpop.f32.mrf.mxu0
        %v287 = vadd.f32 %v226, %v286
        %v288 = vpop.f32.mrf.mxu0
        %289 = vdwg.mxu0
        %290 = vmax.xlane.f32.xlu0 %v284
        %v291 = vpop.xlane.xlu0 %290
        %292 = vmax.xlane.f32.xlu0 %v287
        %v293 = vpop.xlane.xlu0 %292
        %v294 = vsub.f32 %v284, %v291
        %v295 = vsub.f32 %v287, %v293
        %v296 = vmul.f32 %v294, 1.442695
        %v297 = vpow.pop %v296
        %v298 = vmul.f32 %v295, 1.442695
        %v299 = vpow.pop %v298
        %v300 = vld [vmem:[#allocation2] sm:$0xff]
        %v301 = vld [vmem:[#allocation2 + $0x8] sm:$0xff]
        %v302 = vld [vmem:[#allocation2 + $0x10] sm:$0xff]
        %v303 = vld [vmem:[#allocation2 + $0x18] sm:$0xff]
        %v304 = vld [vmem:[#allocation2 + $0x20] sm:$0xff]
        %v305 = vld [vmem:[#allocation2 + $0x28] sm:$0xff]
        %v306 = vld [vmem:[#allocation2 + $0x30] sm:$0xff]
        %v307 = vld [vmem:[#allocation2 + $0x38] sm:$0xff]
        %v308 = vld [vmem:[#allocation2 + $0x40] sm:$0xff]
        %v309 = vld [vmem:[#allocation2 + $0x48] sm:$0xff]
        %v310 = vld [vmem:[#allocation2 + $0x50] sm:$0xff]
        %v311 = vld [vmem:[#allocation2 + $0x58] sm:$0xff]
        %v312 = vld [vmem:[#allocation2 + $0x60] sm:$0xff]
        %v313 = vld [vmem:[#allocation2 + $0x68] sm:$0xff]
        %v314 = vld [vmem:[#allocation2 + $0x70] sm:$0xff]
        %v315 = vld [vmem:[#allocation2 + $0x78] sm:$0xff]
        %316 = vmatprep.subr.mxu0 0.0
        %317 = vmatpush1.msra.mxu0 %v315
        %318 = vmatprep.subr.mxu0 0.0
        %319 = vmatpush1.msra.mxu0 %v314
        %320 = vmatprep.subr.mxu0 0.0
        %321 = vmatpush1.msra.mxu0 %v313
        %322 = vmatprep.subr.mxu0 0.0
        %323 = vmatpush1.msra.mxu0 %v312
        %324 = vmatprep.subr.mxu0 0.0
        %325 = vmatpush1.msra.mxu0 %v311
        %326 = vmatprep.subr.mxu0 0.0
        %327 = vmatpush1.msra.mxu0 %v310
        %328 = vmatprep.subr.mxu0 0.0
        %329 = vmatpush1.msra.mxu0 %v309
        %330 = vmatprep.subr.mxu0 0.0
        %331 = vmatpush1.msra.mxu0 %v308
        %332 = vmatprep.subr.mxu0 0.0
        %333 = vmatpush1.msra.mxu0 %v307
        %334 = vmatprep.subr.mxu0 0.0
        %335 = vmatpush1.msra.mxu0 %v306
        %336 = vmatprep.subr.mxu0 0.0
        %337 = vmatpush1.msra.mxu0 %v305
        %338 = vmatprep.subr.mxu0 0.0
        %339 = vmatpush1.msra.mxu0 %v304
        %340 = vmatprep.subr.mxu0 0.0
        %341 = vmatpush1.msra.mxu0 %v303
        %342 = vmatprep.subr.mxu0 0.0
        %343 = vmatpush1.msra.mxu0 %v302
        %344 = vmatprep.subr.mxu0 0.0
        %345 = vmatpush1.msra.mxu0 %v301
        %346 = vmatprep.subr.mxu0 0.0
        %347 = vmatpush1.msra.mxu0 %v300
        %348 = vmatprep.subr.mxu0 0.0
        %349 = vmatpush2.msra.mxu0 0.0
        %350 = vmatprep.subr.mxu0 0.0
        %351 = vmatpush2.msra.mxu0 0.0
        %352 = vmatprep.subr.mxu0 0.0
        %353 = vmatpush2.msra.mxu0 0.0
        %354 = vmatprep.subr.mxu0 0.0
        %355 = vmatpush2.msra.mxu0 0.0
        %356 = vmatprep.subr.mxu0 0.0
        %357 = vmatpush2.msra.mxu0 0.0
        %358 = vmatprep.subr.mxu0 0.0
        %359 = vmatpush2.msra.mxu0 0.0
        %360 = vmatprep.subr.mxu0 0.0
        %361 = vmatpush2.msra.mxu0 0.0
        %362 = vmatprep.subr.mxu0 0.0
        %363 = vmatpush2.msra.mxu0 0.0
        %364 = vmatprep.subr.mxu0 0.0
        %365 = vmatpush2.msra.mxu0 0.0
        %366 = vmatprep.subr.mxu0 0.0
        %367 = vmatpush2.msra.mxu0 0.0
        %368 = vmatprep.subr.mxu0 0.0
        %369 = vmatpush2.msra.mxu0 0.0
        %370 = vmatprep.subr.mxu0 0.0
        %371 = vmatpush2.msra.mxu0 0.0
        %372 = vmatprep.subr.mxu0 0.0
        %373 = vmatpush2.msra.mxu0 0.0
        %374 = vmatprep.subr.mxu0 0.0
        %375 = vmatpush2.msra.mxu0 0.0
        %376 = vmatprep.subr.mxu0 0.0
        %377 = vmatpush2.msra.mxu0 0.0
        %378 = vmatprep.subr.mxu0 0.0
        %379 = vmatpush2.msra.mxu0 0.0
        %380 = vmatprep.mubr.f32.mxu0 0.0
        %381 = vmatmul.mubr.f32.gmra.mxu0 %v297
        %v382 = vpop.f32.mrf.mxu0
        %v383 = vadd.f32 0.0, %v382
        %v384 = vpop.f32.mrf.mxu0
        %385 = vmatprep.mubr.f32.mxu0 0.0
        %386 = vmatmul.mubr.f32.gmra.mxu0 %v299
        %v387 = vpop.f32.mrf.mxu0
        %v388 = vadd.f32 0.0, %v387
        %v389 = vpop.f32.mrf.mxu0
        %390 = vdwg.mxu0
        %v391 = vrcp.pop %v383
        %v392 = vrcp.pop %v388
        %v393 = vmul.f32 %v297, %v391
        %v394 = vmul.f32 %v299, %v392
        %395 = vst [vmem:[%s206] sm:$0xff] %v393
        %396 = vst [vmem:[%s206 + $0x8] sm:$0xff] %v394
        %s397 = sand.u32 %s116, 1
        %s398 = scalar_lea.sflag [#allocation4], %s397
        %s399 = sand.u32 %s116, 1
        %s400 = smul.addr %s399, 16
        %s401 = scalar_lea.vmem [#allocation5], %s400
        // Predicated region
        $region41: #{tpu_custom_call.1} parent=35 // pred_check
          %p402 = pneg %p126
        $region42: #{tpu_custom_call.1} parent=35 // pred_check_branch
          %404 = sbr.rel (%p402) target = $region44
        $region43: #{tpu_custom_call.1} parent=35 // pred_region
          %s405 = smul.u32 2, %s19
          %s407 = ssub.s32 256, 256
          %408 = vsyncadd %s398, %s407
          %s409 = smul.addr %s405, 128
          %s410 = scalar_lea.hbm %s4, %s409
          %s411 = sshll.u32 %s401, 4
          %s412 = int_to_ptr.vmem [resolvable:$true] %s411
          %417 = dma.vmem_to_hbm [thread:$0]  %s412, 256, %s410, %s398, 128, 128, 8
        $region44: #{tpu_custom_call.1} parent=35 // pred_fallthru
          _
      $region36: #{tpu_custom_call.1} parent=5 // pred_fallthru
        _
      %p418 = scmp.le.s32.totalorder 2, %s14
      // Predicated region
      $region45: #{tpu_custom_call.1} parent=5 // pred_check
        %p419 = pneg %p418
      $region46: #{tpu_custom_call.1} parent=5 // pred_check_branch
        %421 = sbr.rel (%p419) target = $region48
      $region47: #{tpu_custom_call.1} parent=5 // pred_region
        %s422 = ssub.s32 %s14, 2
        // Predicated region
        $region49: #{tpu_custom_call.1} parent=47 // pred_check
          %p423 = pneg %p132
        $region50: #{tpu_custom_call.1} parent=47 // pred_check_branch
          %425 = sbr.rel (%p423) target = $region52
        $region51: #{tpu_custom_call.1} parent=47 // pred_region
          %s426 = sand.u32 %s117, 1
          %s427 = scalar_lea.sflag [#allocation4], %s426
          %s428 = sand.u32 %s117, 1
          %s429 = smul.addr %s428, 16
          %s430 = scalar_lea.vmem [#allocation5], %s429
          %431 = dma.done %s427, 256
        $region52: #{tpu_custom_call.1} parent=47 // pred_fallthru
          _
      $region48: #{tpu_custom_call.1} parent=5 // pred_fallthru
        _
    $region6: #{tpu_custom_call.1} parent=1 // loop_footer
      %s18 = sadd.s32 1, %s14
    $region7: #{tpu_custom_call.1} parent=1 // loop_footer_branch
      %13 = sbr.rel target = $region3
    $region8: #{tpu_custom_call.1} parent=1 // loop_exit
      _
    %432 = vsyncpa [#allocation3], 1
    %s433 = scalar_lea.sflag [#allocation3], 1
    %434 = vsyncpa %s433, 1
    %435 = vsyncpa [#allocation4], 1
    %s436 = scalar_lea.sflag [#allocation4], 1
    %437 = vsyncpa %s436, 1

</llo_original>
